<compile_context>
chip_gen: v5e
topology: v5e:2x2
jax: 0.10.0
libtpu: 0.0.40
codegen_flags: <defaults>
</compile_context>

<pallas_src>
import jax
import jax.numpy as jnp
from jax.experimental import pallas as pl
from jax.experimental.pallas import tpu as pltpu

_LANES = 128
_MAX_BLOCK_ROWS = 2048  # 2048 x 128 f32 = 1 MiB per input tile


def _stable_neg_log_sigmoid(diff):
    # -log(sigmoid(d)) == softplus(-d) == max(-d, 0) + log1p(exp(-|d|))
    return jnp.maximum(-diff, 0.0) + jnp.log1p(jnp.exp(-jnp.abs(diff)))


def _make_kernel(valid_rows_last: int, block_rows: int, num_tiles: int):
    """Per-tile partial sum kernel; masking only on the (possibly ragged) last tile."""
    needs_mask = valid_rows_last != block_rows

    def kernel(chosen_ref, reject_ref, out_ref):
        c = chosen_ref[...].astype(jnp.float32)
        r = reject_ref[...].astype(jnp.float32)
        sp = _stable_neg_log_sigmoid(c - r)  # (block_rows, 128) f32

        def _store(vals):
            # lane-dense (1, 1, 128) column-sum slab per tile
            out_ref[...] = jnp.sum(vals, axis=0).reshape(1, 1, _LANES)

        if not needs_mask:
            _store(sp)
        else:
            pid = pl.program_id(0)
            last = num_tiles - 1

            @pl.when(pid != last)
            def _():
                _store(sp)

            @pl.when(pid == last)
            def _():
                # Only the last tile can read past the array; mask its rows.
                row_idx = jax.lax.broadcasted_iota(jnp.int32, sp.shape, 0)
                _store(jnp.where(row_idx < valid_rows_last, sp, 0.0))

    return kernel


@jax.jit
def pairwise_loss(chosen_reward: jax.Array, reject_reward: jax.Array) -> jax.Array:
    """chosen_reward, reject_reward: shape (batch,). Returns scalar f32 loss."""
    assert chosen_reward.shape == reject_reward.shape
    assert chosen_reward.ndim == 1
    batch = chosen_reward.shape[0]

    main = (batch // _LANES) * _LANES  # 128-aligned prefix handled by the kernel
    tail = batch - main                # <=127 ragged elements handled in JAX

    total = jnp.float32(0.0)

    if main > 0:
        rows_main = main // _LANES

        # Copy-free reshape of the aligned prefix (no full-array pad).
        if tail == 0:
            c2 = chosen_reward.reshape(rows_main, _LANES)
            r2 = reject_reward.reshape(rows_main, _LANES)
        else:
            c2 = chosen_reward[:main].reshape(rows_main, _LANES)
            r2 = reject_reward[:main].reshape(rows_main, _LANES)

        # Tile rows: multiple of 8, capped for VMEM, and >=2 tiles when the
        # work spans more than one tile-worth of rows (v7x 2-TC sharding).
        if rows_main <= 8:
            block_rows = rows_main  # full-dim block, single tile
        else:
            half = (rows_main + 1) // 2
            half = ((half + 7) // 8) * 8
            block_rows = min(_MAX_BLOCK_ROWS, half)
        num_tiles = -(-rows_main // block_rows)
        valid_rows_last = rows_main - (num_tiles - 1) * block_rows

        partials = pl.pallas_call(
            _make_kernel(valid_rows_last, block_rows, num_tiles),
            out_shape=jax.ShapeDtypeStruct((num_tiles, 1, _LANES), jnp.float32),
            grid_spec=pltpu.PrefetchScalarGridSpec(
                num_scalar_prefetch=0,
                grid=(num_tiles,),
                in_specs=[
                    pl.BlockSpec((block_rows, _LANES), lambda i: (i, 0)),
                    pl.BlockSpec((block_rows, _LANES), lambda i: (i, 0)),
                ],
                out_specs=pl.BlockSpec((1, 1, _LANES), lambda i: (i, 0, 0)),
            ),
            compiler_params=pltpu.CompilerParams(
                dimension_semantics=("parallel",),
            ),
        )(c2, r2)

        total = total + jnp.sum(partials)

    if tail > 0:
        # Tiny ragged tail (<128 elems): same stable math in plain JAX.
        ct = chosen_reward[main:].astype(jnp.float32)
        rt = reject_reward[main:].astype(jnp.float32)
        total = total + jnp.sum(_stable_neg_log_sigmoid(ct - rt))

    # Final tiny divide-by-batch (fused by jit with the reduce above).
    # TODO(synk): for tiny production batches, fuse this loss into the upstream
    # reward kernel instead of a standalone pallas_call.
    return total / jnp.float32(batch)


if __name__ == "__main__":
    key = jax.random.PRNGKey(0)
    k_c, k_r = jax.random.split(key)

    def ref_loss(c, r):
        return -jnp.mean(jnp.log(jax.nn.sigmoid(c - r)))

    # Small aligned batch (>=128 so the Pallas kernel actually executes).
    batch = 384
    chosen_reward = jax.random.normal(k_c, (batch,), dtype=jnp.float32)
    reject_reward = jax.random.normal(k_r, (batch,), dtype=jnp.float32)
    loss = pairwise_loss(chosen_reward, reject_reward)
    jax.block_until_ready(loss)
    assert jnp.allclose(loss, ref_loss(chosen_reward, reject_reward),
                        atol=1e-5, rtol=1e-5), loss

    # Ragged batch: multi-tile grid + last-tile row mask + <128-elem JAX tail.
    batch2 = 3000
    c_big = jax.random.normal(k_c, (batch2,), dtype=jnp.float32)
    r_big = jax.random.normal(k_r, (batch2,), dtype=jnp.float32)
    loss2 = pairwise_loss(c_big, r_big)
    jax.block_until_ready(loss2)
    assert jnp.allclose(loss2, ref_loss(c_big, r_big), atol=1e-5, rtol=1e-5), loss2

    # Sub-128 batch: tail-only path.
    batch3 = 8
    c_sm = jax.random.normal(k_c, (batch3,), dtype=jnp.float32)
    r_sm = jax.random.normal(k_r, (batch3,), dtype=jnp.float32)
    loss3 = pairwise_loss(c_sm, r_sm)
    jax.block_until_ready(loss3)
    assert jnp.allclose(loss3, ref_loss(c_sm, r_sm), atol=1e-5, rtol=1e-5), loss3

    print("KERNEL_OK")
</pallas_src>

<mosaic_0001>
module attributes {stable_mosaic.version = 11 : i64} {
  func.func @kernel(%arg0: i32, %arg1: memref<3x128xf32, #tpu.memory_space<vmem>>, %arg2: memref<3x128xf32, #tpu.memory_space<vmem>>, %arg3: memref<1x1x128xf32, #tpu.memory_space<vmem>>) attributes {dimension_semantics = [#tpu.dimension_semantics<parallel>], iteration_bounds = array<i64: 1>, scalar_prefetch = 0 : i64, scratch_operands = 0 : i64, tpu.core_type = #tpu.core_type<tc>, window_params = [{transform_indices = @transform_0, window_bounds = array<i64: 3, 128>}, {transform_indices = @transform_1, window_bounds = array<i64: 3, 128>}, {transform_indices = @transform_2, window_bounds = array<i64: 1, 1, 128>}]} {
    %c0 = arith.constant 0 : index
    %c0_0 = arith.constant 0 : index
    %0 = vector.load %arg1[%c0, %c0_0] : memref<3x128xf32, #tpu.memory_space<vmem>>, vector<3x128xf32>
    %c0_1 = arith.constant 0 : index
    %c0_2 = arith.constant 0 : index
    %1 = vector.load %arg2[%c0_1, %c0_2] : memref<3x128xf32, #tpu.memory_space<vmem>>, vector<3x128xf32>
    %2 = arith.subf %0, %1 : vector<3x128xf32>
    %cst = arith.constant 0.000000e+00 : f32
    %3 = vector.broadcast %cst : f32 to vector<3x128xf32>
    %4 = arith.subf %3, %2 : vector<3x128xf32>
    %cst_3 = arith.constant 0.000000e+00 : f32
    %5 = vector.broadcast %cst_3 : f32 to vector<3x128xf32>
    %6 = arith.maximumf %4, %5 : vector<3x128xf32>
    %7 = math.absf %2 : vector<3x128xf32>
    %cst_4 = arith.constant 0.000000e+00 : f32
    %8 = vector.broadcast %cst_4 : f32 to vector<3x128xf32>
    %9 = arith.subf %8, %7 : vector<3x128xf32>
    %10 = math.exp %9 : vector<3x128xf32>
    %11 = math.log1p %10 : vector<3x128xf32>
    %12 = arith.addf %6, %11 : vector<3x128xf32>
    %cst_5 = arith.constant dense<0.000000e+00> : vector<128xf32>
    %13 = vector.multi_reduction <add>, %12, %cst_5 [0] : vector<3x128xf32> to vector<128xf32>
    %14 = vector.shape_cast %13 : vector<128xf32> to vector<1x1x128xf32>
    %c0_6 = arith.constant 0 : index
    %c0_7 = arith.constant 0 : index
    %c0_8 = arith.constant 0 : index
    %15 = vector.load %arg3[%c0_6, %c0_7, %c0_8] : memref<1x1x128xf32, #tpu.memory_space<vmem>>, vector<1x1x128xf32>
    tpu.vector_store %arg3[%c0_6, %c0_7, %c0_8], %14 {strides = array<i32>} : memref<1x1x128xf32, #tpu.memory_space<vmem>>, vector<1x1x128xf32>,
    return
  }
  func.func @transform_0(%arg0: i32) -> (i32, i32) {
    %c0_i32 = arith.constant 0 : i32
    %c0_i32_0 = arith.constant 0 : i32
    return %arg0, %c0_i32 : i32, i32
  }
  func.func @transform_1(%arg0: i32) -> (i32, i32) {
    %c0_i32 = arith.constant 0 : i32
    %c0_i32_0 = arith.constant 0 : i32
    return %arg0, %c0_i32 : i32, i32
  }
  func.func @transform_2(%arg0: i32) -> (i32, i32, i32) {
    %c0_i32 = arith.constant 0 : i32
    %c0_i32_0 = arith.constant 0 : i32
    %c0_i32_1 = arith.constant 0 : i32
    return %arg0, %c0_i32, %c0_i32_0 : i32, i32, i32
  }
}

</mosaic_0001>

<llo_original>
// kernel: pairwise_loss.1
$region0: #{pairwise_loss.1}
  #allocation0 [shape = 'u32[]', space=smem, size = 0x4, offset = 0x4, fixed_abs, tag = 'smem constant byte address 0x4 - core index']
  #allocation1 [shape = 'u32[72,128]{1,0:T(1,128)}', space=vmem, size = 0x9000, scoped, tag = 'internal scratch']
  %s0 = inlined_call_operand.hbm [shape: f32[3,128], index: 0, kind: input, shape index: {}]
  %s1 = inlined_call_operand.hbm [shape: f32[3,128], index: 1, kind: input, shape index: {}]
  %s2 = inlined_call_operand.vmem [shape: f32[1,1,128], index: 2, kind: output, shape index: {}]
  %s3 = sld [smem:[#allocation0]]
  $region26: #{pairwise_loss.1} parent=0
    _
  %s5 = ssub.s32 1, %s3
  %s6 = scalar_select 0, %s5, %s3
  $region1: #{pairwise_loss.1} parent=0
    #allocation2 [shape = 'u8[2048]{0}', space=vmem, size = 0x800, scoped, tag = 'input window, operand 0, single buffered']
    #allocation3 [shape = 's32[1]{0}', space=sflag, size = 0x4, scoped, tag = 'scoped memory for pairwise_loss.1']
    #allocation4 [shape = 'u8[2048]{0}', space=vmem, size = 0x800, scoped, tag = 'input window, operand 1, single buffered']
    #allocation5 [shape = 's32[1]{0}', space=sflag, size = 0x4, scoped, tag = 'scoped memory for pairwise_loss.1']
    %7 = vsyncpa [#allocation3], 0
    %8 = vsyncpa [#allocation5], 0
    // Predicated region
    $region2: #{pairwise_loss.1} parent=1 // pred_check
      _
    $region3: #{pairwise_loss.1} parent=1 // pred_check_branch
      %10 = sbr.rel (0) target = $region5
    $region4: #{pairwise_loss.1} parent=1 // pred_region
      %12 = vsyncadd [#allocation3], 0
      %s14 = sshll.u32 %s0, 4
      %s15 = int_to_ptr.hbm [resolvable:$true] %s14
      %s16 = sshll.u32 [#allocation2], 4
      %s17 = int_to_ptr.vmem [resolvable:$true] %s16
      %19 = dma.hbm_to_vmem [thread:$0]  %s15, 64, %s17, [#allocation3]
    $region5: #{pairwise_loss.1} parent=1 // pred_fallthru
      _
    // Predicated region
    $region6: #{pairwise_loss.1} parent=1 // pred_check
      _
    $region7: #{pairwise_loss.1} parent=1 // pred_check_branch
      %21 = sbr.rel (0) target = $region9
    $region8: #{pairwise_loss.1} parent=1 // pred_region
      %23 = vsyncadd [#allocation5], 0
      %s25 = sshll.u32 %s1, 4
      %s26 = int_to_ptr.hbm [resolvable:$true] %s25
      %s27 = sshll.u32 [#allocation4], 4
      %s28 = int_to_ptr.vmem [resolvable:$true] %s27
      %30 = dma.hbm_to_vmem [thread:$0]  %s26, 64, %s28, [#allocation5]
    $region9: #{pairwise_loss.1} parent=1 // pred_fallthru
      _
    // Predicated region
    $region10: #{pairwise_loss.1} parent=1 // pred_check
      _
    $region11: #{pairwise_loss.1} parent=1 // pred_check_branch
      %32 = sbr.rel (0) target = $region13
    $region12: #{pairwise_loss.1} parent=1 // pred_region
      %34 = dma.done [#allocation3], 64
    $region13: #{pairwise_loss.1} parent=1 // pred_fallthru
      _
    // Predicated region
    $region14: #{pairwise_loss.1} parent=1 // pred_check
      _
    $region15: #{pairwise_loss.1} parent=1 // pred_check_branch
      %36 = sbr.rel (0) target = $region17
    $region16: #{pairwise_loss.1} parent=1 // pred_region
      %38 = dma.done [#allocation5], 64
    $region17: #{pairwise_loss.1} parent=1 // pred_fallthru
      _
    %v39 = vld [vmem:[#allocation2] sm:$0x7]
    %v40 = vld [vmem:[#allocation4] sm:$0x7]
    %v41 = vsub.f32 %v39, %v40
    %v42 = vsub.f32 0.0, %v41
    %v43 = vmax.f32 %v42, 0.0
    %v44 = vand.u32 2147483647, %v41
    %v45 = vsub.f32 0.0, %v44
    %v46 = vmul.f32 %v45, 1.442695
    %v47 = vpow.pop %v46
    %v48 = vadd.f32 %v47, 1.0
    %v49 = vlog2.pop %v48
    %v50 = vmul.f32 %v49, 0.6931472
    %v51 = vmul.f32 -0.5, %v47
    %v52 = vadd.f32 %v51, 1.0
    %v53 = vmul.f32 %v52, %v47
    %v54 = vand.u32 2147483647, %v47
    %vm55 = vcmp.lt.f32.partialorder %v54, 0.0004427343
    %v56 = vsel %vm55, %v53, %v50
    %v57 = vadd.f32 %v43, %v56
    %vm58 = vcmask 1042432
    %v59 = vsel %vm58, %v57, 0.0
    %v60 = vrot.slane %v59, 4
    %v61 = vadd.f32 %v59, %v60
    %v62 = vrot.slane %v61, 2
    %v63 = vadd.f32 %v61, %v62
    %v64 = vrot.slane %v63, 1
    %v65 = vadd.f32 %v63, %v64
    %66 = vst [vmem:[%s2] sm:$0x1] %v65
    // Predicated region
    $region18: #{pairwise_loss.1} parent=1 // pred_check
      _
    $region19: #{pairwise_loss.1} parent=1 // pred_check_branch
      %68 = sbr.rel (0) target = $region21
    $region20: #{pairwise_loss.1} parent=1 // pred_region
      _
    $region21: #{pairwise_loss.1} parent=1 // pred_fallthru
      _
    // Predicated region
    $region22: #{pairwise_loss.1} parent=1 // pred_check
      _
    $region23: #{pairwise_loss.1} parent=1 // pred_check_branch
      %70 = sbr.rel (0) target = $region25
    $region24: #{pairwise_loss.1} parent=1 // pred_region
      _
    $region25: #{pairwise_loss.1} parent=1 // pred_fallthru
      _
    %71 = vsyncpa [#allocation3], 1
    %72 = vsyncpa [#allocation5], 1

</llo_original>
